<compile_context>
chip_gen: v6e
topology: v6e:2x2x1
jax: 0.10.0
libtpu: 0.0.40
codegen_flags: <defaults>
</compile_context>

<pallas_src>
import jax
import jax.numpy as jnp
from jax import lax
from jax.experimental import pallas as pl
from jax.experimental.pallas import tpu as pltpu


def _round_down(x, m):
    return (x // m) * m


def _jax_kl_sum(p, q):
    # Tail / tiny-input fallback, same formula as the module.
    p = p.astype(jnp.float32)
    q = q.astype(jnp.float32)
    return jnp.sum(q * (jnp.log(q) - jnp.log(p)))


def multinomial_kl_divergence_loss(p_proba, q_proba):
    """sum(q * (log q - log p)) / (size(0) * size(1)) as a Pallas TPU kernel."""
    assert p_proba.shape == q_proba.shape
    assert p_proba.ndim >= 2, "module requires size(0) and size(1)"
    b, c = p_proba.shape[0], p_proba.shape[1]
    inv_scale = jnp.float32(1.0 / float(b * c))

    n = 1
    for d in p_proba.shape:
        n *= d
    itemsize = jnp.dtype(p_proba.dtype).itemsize

    # ---- lane tile: prefer a TL that also leaves rows a multiple of 8 ------
    TL = None
    for cand in (512, 256, 128):
        if n % (8 * cand) == 0:
            TL = cand
            break
    if TL is None:
        for cand in (512, 256, 128):
            if n % cand == 0:
                TL = cand
                break
    if TL is None:
        TL = 128

    tail = n % TL                       # ragged tail folded in plain JAX
    n_slab = n - tail
    rows = n_slab // TL

    p_flat = p_proba.reshape(-1)
    q_flat = q_proba.reshape(-1)

    tail_sum = jnp.float32(0.0)
    if tail:
        # Rare case (n not a multiple of 128).  The head slice below may
        # materialize a copy; acceptable for this edge case only.
        tail_sum = _jax_kl_sum(p_flat[n_slab:], q_flat[n_slab:])
        p_flat = lax.slice(p_flat, (0,), (n_slab,))
        q_flat = lax.slice(q_flat, (0,), (n_slab,))

    if rows == 0:
        # Fewer than 128 elements total: not worth a kernel launch.
        return tail_sum * inv_scale

    p2 = p_flat.reshape(rows, TL)
    q2 = q_flat.reshape(rows, TL)

    if rows < 8:
        # Tiny input (< 8*TL elements): pad rows up to the sublane minimum
        # with the neutral value 1.0 (term == 0).  This copies a few KiB at
        # most, unlike the old full-array pad.
        pad = 8 - rows
        p2 = jnp.pad(p2, ((0, pad), (0, 0)), constant_values=1.0)
        q2 = jnp.pad(q2, ((0, pad), (0, 0)), constant_values=1.0)
        rows = 8

    # ---- row tiling ---------------------------------------------------------
    BLOCK_ELEMS = 1024 * 1024                       # ~4 MiB per f32 input block
    TR_MAX = max(8, _round_down(BLOCK_ELEMS // TL, 8))
    TR = min(TR_MAX, _round_down(rows, 8))          # multiple of 8, never > rows
    tiles = pl.cdiv(rows, TR)

    num_chunks = 2 if tiles >= 4 else 1             # megacore split only if worth it
    steps = pl.cdiv(tiles, num_chunks)
    total_blocks = num_chunks * steps
    needs_mask = total_blocks * TR > rows           # partial / duplicate last blocks

    last_blk = tiles - 1
    if total_blocks > tiles:
        def in_index_map(ci, si):
            # Clamp so no block starts past the array; duplicates are fully masked.
            return (jnp.minimum(ci * steps + si, last_blk), 0)
    else:
        def in_index_map(ci, si):
            return (ci * steps + si, 0)

    def kernel(p_ref, q_ref, out_ref):
        @pl.when(pl.program_id(1) == 0)
        def _():
            out_ref[...] = jnp.zeros_like(out_ref)

        p = p_ref[...].astype(jnp.float32)
        q = q_ref[...].astype(jnp.float32)

        if needs_mask:
            blk = pl.program_id(0) * steps + pl.program_id(1)
            rid = blk * TR + lax.broadcasted_iota(jnp.int32, (TR, TL), 0)
            valid = rid < rows
            # Replace out-of-range rows with the neutral value BEFORE the log,
            # so stale/garbage VMEM data never produces NaN/Inf.
            p = jnp.where(valid, p, 1.0)
            q = jnp.where(valid, q, 1.0)

        # One log per element: q * log(q / p).  (Module computes
        # log q - log p; identical up to f32 rounding, half the EUP pushes.)
        term = q * jnp.log(q * pl.reciprocal(p, approx=False))
        # Fold sublane groups with pure VPU adds into the resident (8, TL)
        # accumulator block -- no XLU cross-lane reduce, no scalar RMW.
        out_ref[...] += jnp.sum(term.reshape(TR // 8, 8, TL), axis=0)

    in_spec = pl.BlockSpec((TR, TL), in_index_map)
    out_spec = pl.BlockSpec((None, 8, TL), lambda ci, si: (ci, 0, 0))

    partials = pl.pallas_call(
        kernel,
        out_shape=jax.ShapeDtypeStruct((num_chunks, 8, TL), jnp.float32),
        grid_spec=pltpu.PrefetchScalarGridSpec(
            num_scalar_prefetch=0,
            grid=(num_chunks, steps),
            in_specs=[in_spec, in_spec],
            out_specs=out_spec,
        ),
        compiler_params=pltpu.CompilerParams(
            dimension_semantics=("parallel", "arbitrary"),
            vmem_limit_bytes=40 * 1024 * 1024,   # <= 48 MiB: safe on v7x's 64 MiB VMEM
        ),
        cost_estimate=pl.CostEstimate(
            flops=4 * n_slab,
            transcendentals=2 * n_slab,          # one log + one reciprocal per elem
            bytes_accessed=2 * itemsize * n_slab + num_chunks * 8 * TL * 4,
        ),
    )(p2, q2)

    # Final scalar reduction + normalization outside the kernel (tiny).
    return (jnp.sum(partials) + tail_sum) * inv_scale


def _reference(p, q):
    loss = q * (jnp.log(q) - jnp.log(p))
    return jnp.sum(loss) / (p.shape[1] * p.shape[0])


if __name__ == "__main__":
    key = jax.random.PRNGKey(0)
    k1, k2 = jax.random.split(key)

    B, C, H, W = 2, 4, 16, 16
    # Valid probability tensors via softmax over the channel axis.
    p_logits = jax.random.normal(k1, (B, C, H, W), dtype=jnp.float32)
    q_logits = jax.random.normal(k2, (B, C, H, W), dtype=jnp.float32)
    p_proba = jax.nn.softmax(p_logits, axis=1)
    q_proba = jax.nn.softmax(q_logits, axis=1)

    loss = multinomial_kl_divergence_loss(p_proba, q_proba)
    loss = jax.block_until_ready(loss)

    ref = _reference(p_proba, q_proba)
    assert jnp.allclose(loss, ref, rtol=1e-5, atol=1e-6), (loss, ref)

    print("KERNEL_OK")
</pallas_src>

<mosaic_0001>
module attributes {stable_mosaic.version = 11 : i64} {
  func.func @kernel(%arg0: i32, %arg1: i32, %arg2: memref<8x256xf32, #tpu.memory_space<vmem>>, %arg3: memref<8x256xf32, #tpu.memory_space<vmem>>, %arg4: memref<1x8x256xf32, #tpu.memory_space<vmem>>) attributes {dimension_semantics = [#tpu.dimension_semantics<parallel>, #tpu.dimension_semantics<arbitrary>], iteration_bounds = array<i64: 1, 1>, scalar_prefetch = 0 : i64, scratch_operands = 0 : i64, tpu.core_type = #tpu.core_type<tc>, window_params = [{transform_indices = @transform_0, window_bounds = array<i64: 8, 256>}, {transform_indices = @transform_1, window_bounds = array<i64: 8, 256>}, {transform_indices = @transform_2, window_bounds = array<i64: 1, 8, 256>}]} {
    %c0_i32 = arith.constant 0 : i32
    %0 = arith.cmpi eq, %arg1, %c0_i32 : i32
    %1 = arith.extui %0 : i1 to i32
    %c0_i32_0 = arith.constant 0 : i32
    %2 = arith.cmpi ne, %1, %c0_i32_0 : i32
    scf.if %2 {
      %cst_10 = arith.constant 0.000000e+00 : f32
      %17 = vector.broadcast %cst_10 : f32 to vector<8x256xf32>
      %c0_11 = arith.constant 0 : index
      %c0_12 = arith.constant 0 : index
      %c0_13 = arith.constant 0 : index
      %18 = vector.load %arg4[%c0_11, %c0_12, %c0_13] : memref<1x8x256xf32, #tpu.memory_space<vmem>>, vector<1x8x256xf32>
      %19 = vector.shape_cast %18 : vector<1x8x256xf32> to vector<8x256xf32>
      %20 = vector.shape_cast %17 : vector<8x256xf32> to vector<1x8x256xf32>
      tpu.vector_store %arg4[%c0_11, %c0_12, %c0_13], %20 {strides = array<i32>} : memref<1x8x256xf32, #tpu.memory_space<vmem>>, vector<1x8x256xf32>,
    } else {
    }
    %c0 = arith.constant 0 : index
    %c0_1 = arith.constant 0 : index
    %3 = vector.load %arg2[%c0, %c0_1] : memref<8x256xf32, #tpu.memory_space<vmem>>, vector<8x256xf32>
    %c0_2 = arith.constant 0 : index
    %c0_3 = arith.constant 0 : index
    %4 = vector.load %arg3[%c0_2, %c0_3] : memref<8x256xf32, #tpu.memory_space<vmem>>, vector<8x256xf32>
    %5 = tpu.reciprocal %3 : vector<8x256xf32> -> vector<8x256xf32>
    %6 = arith.mulf %4, %5 : vector<8x256xf32>
    %7 = math.log %6 : vector<8x256xf32>
    %8 = arith.mulf %4, %7 : vector<8x256xf32>
    %c0_4 = arith.constant 0 : index
    %c0_5 = arith.constant 0 : index
    %c0_6 = arith.constant 0 : index
    %9 = vector.load %arg4[%c0_4, %c0_5, %c0_6] : memref<1x8x256xf32, #tpu.memory_space<vmem>>, vector<1x8x256xf32>
    %10 = vector.shape_cast %9 : vector<1x8x256xf32> to vector<8x256xf32>
    %11 = vector.shape_cast %8 : vector<8x256xf32> to vector<1x8x256xf32>
    %cst = arith.constant dense<0.000000e+00> : vector<8x256xf32>
    %12 = vector.multi_reduction <add>, %11, %cst [0] : vector<1x8x256xf32> to vector<8x256xf32>
    %13 = arith.addf %10, %12 : vector<8x256xf32>
    %c0_7 = arith.constant 0 : index
    %c0_8 = arith.constant 0 : index
    %c0_9 = arith.constant 0 : index
    %14 = vector.load %arg4[%c0_7, %c0_8, %c0_9] : memref<1x8x256xf32, #tpu.memory_space<vmem>>, vector<1x8x256xf32>
    %15 = vector.shape_cast %14 : vector<1x8x256xf32> to vector<8x256xf32>
    %16 = vector.shape_cast %13 : vector<8x256xf32> to vector<1x8x256xf32>
    tpu.vector_store %arg4[%c0_7, %c0_8, %c0_9], %16 {strides = array<i32>} : memref<1x8x256xf32, #tpu.memory_space<vmem>>, vector<1x8x256xf32>,
    return
  }
  func.func @transform_0(%arg0: i32, %arg1: i32) -> (i32, i32) {
    %c1_i32 = arith.constant 1 : i32
    %0 = arith.muli %arg0, %c1_i32 : i32
    %1 = arith.addi %0, %arg1 : i32
    %c0_i32 = arith.constant 0 : i32
    %c0_i32_0 = arith.constant 0 : i32
    return %1, %c0_i32 : i32, i32
  }
  func.func @transform_1(%arg0: i32, %arg1: i32) -> (i32, i32) {
    %c1_i32 = arith.constant 1 : i32
    %0 = arith.muli %arg0, %c1_i32 : i32
    %1 = arith.addi %0, %arg1 : i32
    %c0_i32 = arith.constant 0 : i32
    %c0_i32_0 = arith.constant 0 : i32
    return %1, %c0_i32 : i32, i32
  }
  func.func @transform_2(%arg0: i32, %arg1: i32) -> (i32, i32, i32) {
    %c0_i32 = arith.constant 0 : i32
    %c0_i32_0 = arith.constant 0 : i32
    %c0_i32_1 = arith.constant 0 : i32
    return %arg0, %c0_i32, %c0_i32_0 : i32, i32, i32
  }
}

</mosaic_0001>

<llo_original>
// kernel: tpu_custom_call.1
$region0: #{tpu_custom_call.1}
  #allocation0 [shape = 'u32[]', space=smem, size = 0x4, offset = 0x4, fixed_abs, tag = 'smem constant byte address 0x4 - core index']
  #allocation1 [shape = 'u32[144,128]{1,0:T(1,128)}', space=vmem, size = 0x12000, scoped, tag = 'internal scratch']
  %s0 = inlined_call_operand.hbm [shape: f32[8,256], index: 0, kind: input, shape index: {}]
  %s1 = inlined_call_operand.hbm [shape: f32[8,256], index: 1, kind: input, shape index: {}]
  %s2 = inlined_call_operand.hbm [shape: f32[1,8,256], index: 2, kind: output, shape index: {}]
  %s3 = sld [smem:[#allocation0]]
  $region30: #{tpu_custom_call.1} parent=0
    _
  %s5 = ssub.s32 1, %s3
  %s6 = scalar_select 0, %s5, %s3
  $region1: #{tpu_custom_call.1} parent=0
    #allocation2 [shape = 'u8[8192]{0}', space=vmem, size = 0x2000, scoped, tag = 'input window, operand 0, single buffered']
    #allocation3 [shape = 's32[1]{0}', space=sflag, size = 0x4, scoped, tag = 'scoped memory for tpu_custom_call.1']
    #allocation4 [shape = 's32[1]{0}', space=sflag, size = 0x4, scoped, tag = 'scoped memory for tpu_custom_call.1']
    #allocation5 [shape = 'u8[8192]{0}', space=vmem, size = 0x2000, scoped, tag = 'input window, operand 1, single buffered']
    #allocation6 [shape = 's32[1]{0}', space=sflag, size = 0x4, scoped, tag = 'scoped memory for tpu_custom_call.1']
    #allocation7 [shape = 'u8[8192]{0}', space=vmem, size = 0x2000, scoped, tag = 'output window, operand 0, single buffered']
    %7 = vsyncpa [#allocation3], 0
    %8 = vsyncpa [#allocation6], 0
    %9 = vsyncpa [#allocation4], 0
    // Predicated region
    $region2: #{tpu_custom_call.1} parent=1 // pred_check
      _
    $region3: #{tpu_custom_call.1} parent=1 // pred_check_branch
      %11 = sbr.rel (0) target = $region5
    $region4: #{tpu_custom_call.1} parent=1 // pred_region
      %s12 = sadd.s32 0, 0
      %s14 = ssub.s32 256, 256
      %15 = vsyncadd [#allocation3], %s14
      %s16 = smul.addr %s12, 2
      %s17 = smul.addr %s16, 128
      %s18 = scalar_lea.hbm %s0, %s17
      %s20 = sshll.u32 [#allocation2], 4
      %s21 = int_to_ptr.vmem [resolvable:$true] %s20
      %23 = dma.hbm_to_vmem [thread:$0]  %s18, 256, %s21, [#allocation3]
    $region5: #{tpu_custom_call.1} parent=1 // pred_fallthru
      _
    // Predicated region
    $region6: #{tpu_custom_call.1} parent=1 // pred_check
      _
    $region7: #{tpu_custom_call.1} parent=1 // pred_check_branch
      %25 = sbr.rel (0) target = $region9
    $region8: #{tpu_custom_call.1} parent=1 // pred_region
      %s26 = sadd.s32 0, 0
      %s28 = ssub.s32 256, 256
      %29 = vsyncadd [#allocation6], %s28
      %s30 = smul.addr %s26, 2
      %s31 = smul.addr %s30, 128
      %s32 = scalar_lea.hbm %s1, %s31
      %s34 = sshll.u32 [#allocation5], 4
      %s35 = int_to_ptr.vmem [resolvable:$true] %s34
      %37 = dma.hbm_to_vmem [thread:$0]  %s32, 256, %s35, [#allocation6]
    $region9: #{tpu_custom_call.1} parent=1 // pred_fallthru
      _
    // Predicated region
    $region10: #{tpu_custom_call.1} parent=1 // pred_check
      _
    $region11: #{tpu_custom_call.1} parent=1 // pred_check_branch
      %39 = sbr.rel (0) target = $region13
    $region12: #{tpu_custom_call.1} parent=1 // pred_region
      %40 = dma.done [#allocation3], 256
    $region13: #{tpu_custom_call.1} parent=1 // pred_fallthru
      _
    // Predicated region
    $region14: #{tpu_custom_call.1} parent=1 // pred_check
      _
    $region15: #{tpu_custom_call.1} parent=1 // pred_check_branch
      %42 = sbr.rel (0) target = $region17
    $region16: #{tpu_custom_call.1} parent=1 // pred_region
      %43 = dma.done [#allocation6], 256
    $region17: #{tpu_custom_call.1} parent=1 // pred_fallthru
      _
    %s44 = sadd.s32 0, 0
    %s45 = sadd.s32 0, 0
    %p46 = scmp.eq.s32.totalorder 0, 0
    // Predicated region
    $region18: #{tpu_custom_call.1} parent=1 // pred_check
      %p47 = pneg %p46
    $region19: #{tpu_custom_call.1} parent=1 // pred_check_branch
      %49 = sbr.rel (%p47) target = $region21
    $region20: #{tpu_custom_call.1} parent=1 // pred_region
      %50 = vst [vmem:[#allocation7] sm:$0xff] 0.0
      %51 = vst [vmem:[#allocation7 + $0x8] sm:$0xff] 0.0
    $region21: #{tpu_custom_call.1} parent=1 // pred_fallthru
      _
    %v52 = vld [vmem:[#allocation2] sm:$0xff]
    %v53 = vld [vmem:[#allocation2 + $0x8] sm:$0xff]
    %v54 = vld [vmem:[#allocation5] sm:$0xff]
    %v55 = vld [vmem:[#allocation5 + $0x8] sm:$0xff]
    %v56 = vrcp.pop %v52
    %v57 = vrcp.pop %v53
    %v58 = vmul.f32 %v54, %v56
    %v59 = vmul.f32 %v55, %v57
    %v60 = vlog2.pop %v58
    %v61 = vmul.f32 %v60, 0.6931472
    %v62 = vlog2.pop %v59
    %v63 = vmul.f32 %v62, 0.6931472
    %v64 = vmul.f32 %v54, %v61
    %v65 = vmul.f32 %v55, %v63
    %v66 = vld [vmem:[#allocation7] sm:$0xff]
    %v67 = vld [vmem:[#allocation7 + $0x8] sm:$0xff]
    %v68 = vadd.f32 %v64, 0.0
    %v69 = vadd.f32 %v65, 0.0
    %v70 = vadd.f32 %v66, %v68
    %v71 = vadd.f32 %v67, %v69
    %72 = vst [vmem:[#allocation7] sm:$0xff] %v70
    %73 = vst [vmem:[#allocation7 + $0x8] sm:$0xff] %v71
    // Predicated region
    $region22: #{tpu_custom_call.1} parent=1 // pred_check
      _
    $region23: #{tpu_custom_call.1} parent=1 // pred_check_branch
      %75 = sbr.rel (0) target = $region25
    $region24: #{tpu_custom_call.1} parent=1 // pred_region
      %s77 = ssub.s32 256, 256
      %78 = vsyncadd [#allocation4], %s77
      %s80 = sshll.u32 [#allocation7], 4
      %s81 = int_to_ptr.vmem [resolvable:$true] %s80
      %83 = dma.vmem_to_hbm [thread:$0]  %s81, 256, %s2, [#allocation4]
    $region25: #{tpu_custom_call.1} parent=1 // pred_fallthru
      _
    // Predicated region
    $region26: #{tpu_custom_call.1} parent=1 // pred_check
      _
    $region27: #{tpu_custom_call.1} parent=1 // pred_check_branch
      %85 = sbr.rel (0) target = $region29
    $region28: #{tpu_custom_call.1} parent=1 // pred_region
      %86 = dma.done [#allocation4], 256
    $region29: #{tpu_custom_call.1} parent=1 // pred_fallthru
      _
    %87 = vsyncpa [#allocation3], 1
    %88 = vsyncpa [#allocation6], 1
    %89 = vsyncpa [#allocation4], 1

</llo_original>
